<compile_context>
chip_gen: v5e
topology: v5e:2x2
jax: 0.10.0
libtpu: 0.0.40
codegen_flags: <defaults>
</compile_context>

<pallas_src>
import numpy as np

import jax
import jax.numpy as jnp
from jax.experimental import pallas as pl
from jax.experimental.pallas import tpu as pltpu


def _round_up(x, m):
    return (x + m - 1) // m * m


def _make_addshift_kernel(groups_h, groups_w, hout, wout, extra_pad):
    """Build a kernel body with all shifts / destination channels baked in.

    groups_h[co] / groups_w[co] are tuples of (ci, pad): the input channels
    (and their static spatial shifts) that accumulate into output channel co
    for the H-shift / W-shift branch respectively.
    """
    ep = extra_pad

    def kernel(x_ref, out_h_ref, out_w_ref):
        # x_ref:     (1, c_in, hin, win)  VMEM block for one batch element.
        # out_*_ref: (1, c_out, hout, wout) VMEM blocks, written once per co.

        def accumulate(members, h_branch):
            acc = None
            for ci, pad in members:
                if h_branch:
                    crop = x_ref[0, ci, pad:pad + hout, ep:ep + wout]
                else:
                    crop = x_ref[0, ci, ep:ep + hout, pad:pad + wout]
                crop = crop.astype(jnp.float32)        # accumulate in f32
                acc = crop if acc is None else acc + crop
            return acc

        for co, members in enumerate(groups_h):
            acc = accumulate(members, True)
            if acc is None:                            # no channel maps here
                out_h_ref[0, co] = jnp.zeros((hout, wout), out_h_ref.dtype)
            else:
                out_h_ref[0, co] = acc.astype(out_h_ref.dtype)

        for co, members in enumerate(groups_w):
            acc = accumulate(members, False)
            if acc is None:
                out_w_ref[0, co] = jnp.zeros((hout, wout), out_w_ref.dtype)
            else:
                out_w_ref[0, co] = acc.astype(out_w_ref.dtype)

    return kernel


class LoraModuleClonePallas:
    """JAX/Pallas port of lora_module_clone.

    shift_pads (from __init__) and c1_idxes / c2_idxes (forward args) are
    treated as static configuration and folded into the trace; calling with a
    different index set triggers a retrace (cached per unique configuration).
    """

    def __init__(self, pad_lk, shift_pads, small_kernel, c_out, c_in):
        self.c_in = int(c_in)
        self.c_out = int(c_out)
        self.pad_lk = int(pad_lk)
        self.extra_pad = int(pad_lk) - int(small_kernel) // 2
        # Negative extra_pad would silently wrap (Python negative slicing)
        # instead of matching the CUDA op's padding behaviour.
        assert 0 <= self.extra_pad <= self.pad_lk, "extra_pad out of range"
        sp = np.asarray(shift_pads, np.int64).reshape(-1)
        assert sp.shape == (self.c_in,), (sp.shape, self.c_in)
        assert np.all((sp >= 0) & (sp <= self.pad_lk)), \
            "shift_pads must be in [0, pad_lk]"
        self.shift_pads = tuple(int(p) for p in sp)
        self._cache = {}

    def _grouped(self, idxes):
        groups = [[] for _ in range(self.c_out)]
        for ci, co in enumerate(idxes):
            groups[co].append((ci, self.shift_pads[ci]))
        return tuple(tuple(g) for g in groups)

    def _build(self, b, hout, wout, dtype, c1, c2):
        key = (b, hout, wout, np.dtype(dtype).name, c1, c2)
        fn = self._cache.get(key)
        if fn is not None:
            return fn

        hin, win = hout + self.pad_lk, wout + self.pad_lk
        kernel = _make_addshift_kernel(self._grouped(c1), self._grouped(c2),
                                       hout, wout, self.extra_pad)
        out_sd = jax.ShapeDtypeStruct((b, self.c_out, hout, wout), dtype)

        # VMEM estimate: double-buffered input block + two double-buffered
        # output blocks (padded to the (8, 128) layout granule).
        elt = np.dtype(dtype).itemsize
        in_blk = self.c_in * _round_up(hin, 8) * _round_up(win, 128) * elt
        out_blk = self.c_out * _round_up(hout, 8) * _round_up(wout, 128) * elt
        est = 2 * in_blk + 2 * 2 * out_blk
        cp_kwargs = dict(dimension_semantics=("parallel",))
        if est > (24 << 20):
            # TODO(synk): for very large c_out*hout*wout, additionally tile
            # c_out (or H) as a second grid axis so blocks fit v7x's 64 MiB.
            cp_kwargs["vmem_limit_bytes"] = int(min(est + (8 << 20), 64 << 20))

        fn = pl.pallas_call(
            kernel,
            out_shape=(out_sd, out_sd),
            grid=(b,),
            in_specs=[
                pl.BlockSpec((1, self.c_in, hin, win),
                             lambda bi: (bi, 0, 0, 0)),
            ],
            out_specs=(
                pl.BlockSpec((1, self.c_out, hout, wout),
                             lambda bi: (bi, 0, 0, 0)),
                pl.BlockSpec((1, self.c_out, hout, wout),
                             lambda bi: (bi, 0, 0, 0)),
            ),
            compiler_params=pltpu.CompilerParams(**cp_kwargs),
        )
        self._cache[key] = fn
        return fn

    def __call__(self, x, b, hout, wout, c1_idxes, c2_idxes):
        hin, win = hout + self.pad_lk, wout + self.pad_lk
        assert x.shape == (b, self.c_in, hin, win), \
            (x.shape, (b, self.c_in, hin, win))

        # Static destination-channel buffers (pulled to host once; retrace on
        # change). Range-check: OOB VMEM writes are unchecked on TPU.
        c1 = tuple(int(i) for i in np.asarray(jax.device_get(c1_idxes)).reshape(-1))
        c2 = tuple(int(i) for i in np.asarray(jax.device_get(c2_idxes)).reshape(-1))
        assert len(c1) == self.c_in and len(c2) == self.c_in
        assert all(0 <= i < self.c_out for i in c1 + c2), \
            "c1_idxes/c2_idxes must be in [0, c_out)"

        fn = self._build(b, hout, wout, x.dtype, c1, c2)
        out_h, out_w = fn(x)
        return [out_h, out_w]


def _addshift_reference(x, idxes, shift_pads, extra_pad, c_out, hout, wout, flag):
    """Pure-numpy reference of AddShift_ops for the correctness check."""
    x = np.asarray(x)
    B, c_in, hin, win = x.shape
    out = np.zeros((B, c_out, hout, wout), dtype=x.dtype)
    for ci in range(c_in):
        p = int(shift_pads[ci])
        co = int(idxes[ci])
        if flag == 1:
            crop = x[:, ci, p:p + hout, extra_pad:extra_pad + wout]
        else:
            crop = x[:, ci, extra_pad:extra_pad + hout, p:p + wout]
        out[:, co] += crop
    return out


if __name__ == "__main__":
    # Small, deterministic example consistent with the module's forward.
    b, c_in, c_out = 2, 8, 4
    hout = wout = 16
    pad_lk, small_kernel = 3, 3
    extra_pad = pad_lk - small_kernel // 2
    hin, win = hout + pad_lk, wout + pad_lk

    key = jax.random.PRNGKey(0)
    kx, k1, k2 = jax.random.split(key, 3)
    x = jax.random.normal(kx, (b, c_in, hin, win), dtype=jnp.float32)
    c1_idxes = jax.random.randint(k1, (c_in,), 0, c_out, dtype=jnp.int32)
    c2_idxes = jax.random.randint(k2, (c_in,), 0, c_out, dtype=jnp.int32)
    shift_pads = [int(i % (pad_lk + 1)) for i in range(c_in)]   # shifts in [0, pad_lk]

    module = LoraModuleClonePallas(pad_lk, shift_pads, small_kernel, c_out, c_in)
    out = module(x, b, hout, wout, c1_idxes, c2_idxes)
    out = jax.block_until_ready(out)

    ref_h = _addshift_reference(x, np.asarray(c1_idxes), shift_pads, extra_pad,
                                c_out, hout, wout, flag=1)
    ref_w = _addshift_reference(x, np.asarray(c2_idxes), shift_pads, extra_pad,
                                c_out, hout, wout, flag=0)
    np.testing.assert_allclose(np.asarray(out[0]), ref_h, rtol=1e-6, atol=1e-6)
    np.testing.assert_allclose(np.asarray(out[1]), ref_w, rtol=1e-6, atol=1e-6)

    print("KERNEL_OK")
</pallas_src>

<mosaic_0001>
module attributes {stable_mosaic.version = 11 : i64} {
  func.func @kernel(%arg0: i32, %arg1: memref<1x8x19x19xf32, #tpu.memory_space<vmem>>, %arg2: memref<1x4x16x16xf32, #tpu.memory_space<vmem>>, %arg3: memref<1x4x16x16xf32, #tpu.memory_space<vmem>>) attributes {dimension_semantics = [#tpu.dimension_semantics<parallel>], iteration_bounds = array<i64: 2>, scalar_prefetch = 0 : i64, scratch_operands = 0 : i64, tpu.core_type = #tpu.core_type<tc>, window_params = [{transform_indices = @transform_0, window_bounds = array<i64: 1, 8, 19, 19>}, {transform_indices = @transform_1, window_bounds = array<i64: 1, 4, 16, 16>}, {transform_indices = @transform_2, window_bounds = array<i64: 1, 4, 16, 16>}]} {
    %c0 = arith.constant 0 : index
    %c2 = arith.constant 2 : index
    %c2_0 = arith.constant 2 : index
    %c2_1 = arith.constant 2 : index
    %0 = vector.load %arg1[%c0, %c2, %c2_0, %c2_1] : memref<1x8x19x19xf32, #tpu.memory_space<vmem>>, vector<1x1x16x16xf32>
    %1 = vector.shape_cast %0 : vector<1x1x16x16xf32> to vector<16x16xf32>
    %c0_2 = arith.constant 0 : index
    %c6 = arith.constant 6 : index
    %c2_3 = arith.constant 2 : index
    %c2_4 = arith.constant 2 : index
    %2 = vector.load %arg1[%c0_2, %c6, %c2_3, %c2_4] : memref<1x8x19x19xf32, #tpu.memory_space<vmem>>, vector<1x1x16x16xf32>
    %3 = vector.shape_cast %2 : vector<1x1x16x16xf32> to vector<16x16xf32>
    %4 = arith.addf %1, %3 : vector<16x16xf32>
    %c0_5 = arith.constant 0 : index
    %c0_6 = arith.constant 0 : index
    %c0_7 = arith.constant 0 : index
    %c0_8 = arith.constant 0 : index
    %5 = vector.load %arg2[%c0_5, %c0_6, %c0_7, %c0_8] : memref<1x4x16x16xf32, #tpu.memory_space<vmem>>, vector<1x1x16x16xf32>
    %6 = vector.shape_cast %5 : vector<1x1x16x16xf32> to vector<16x16xf32>
    %7 = vector.shape_cast %4 : vector<16x16xf32> to vector<1x1x16x16xf32>
    tpu.vector_store %arg2[%c0_5, %c0_6, %c0_7, %c0_8], %7 {strides = array<i32>} : memref<1x4x16x16xf32, #tpu.memory_space<vmem>>, vector<1x1x16x16xf32>,
    %cst = arith.constant 0.000000e+00 : f32
    %8 = vector.broadcast %cst : f32 to vector<16x16xf32>
    %c0_9 = arith.constant 0 : index
    %c1 = arith.constant 1 : index
    %c0_10 = arith.constant 0 : index
    %c0_11 = arith.constant 0 : index
    %9 = vector.load %arg2[%c0_9, %c1, %c0_10, %c0_11] : memref<1x4x16x16xf32, #tpu.memory_space<vmem>>, vector<1x1x16x16xf32>
    %10 = vector.shape_cast %9 : vector<1x1x16x16xf32> to vector<16x16xf32>
    %11 = vector.shape_cast %8 : vector<16x16xf32> to vector<1x1x16x16xf32>
    tpu.vector_store %arg2[%c0_9, %c1, %c0_10, %c0_11], %11 {strides = array<i32>} : memref<1x4x16x16xf32, #tpu.memory_space<vmem>>, vector<1x1x16x16xf32>,
    %c0_12 = arith.constant 0 : index
    %c0_13 = arith.constant 0 : index
    %c0_14 = arith.constant 0 : index
    %c2_15 = arith.constant 2 : index
    %12 = vector.load %arg1[%c0_12, %c0_13, %c0_14, %c2_15] : memref<1x8x19x19xf32, #tpu.memory_space<vmem>>, vector<1x1x16x16xf32>
    %13 = vector.shape_cast %12 : vector<1x1x16x16xf32> to vector<16x16xf32>
    %c0_16 = arith.constant 0 : index
    %c1_17 = arith.constant 1 : index
    %c1_18 = arith.constant 1 : index
    %c2_19 = arith.constant 2 : index
    %14 = vector.load %arg1[%c0_16, %c1_17, %c1_18, %c2_19] : memref<1x8x19x19xf32, #tpu.memory_space<vmem>>, vector<1x1x16x16xf32>
    %15 = vector.shape_cast %14 : vector<1x1x16x16xf32> to vector<16x16xf32>
    %16 = arith.addf %13, %15 : vector<16x16xf32>
    %c0_20 = arith.constant 0 : index
    %c7 = arith.constant 7 : index
    %c3 = arith.constant 3 : index
    %c2_21 = arith.constant 2 : index
    %17 = vector.load %arg1[%c0_20, %c7, %c3, %c2_21] : memref<1x8x19x19xf32, #tpu.memory_space<vmem>>, vector<1x1x16x16xf32>
    %18 = vector.shape_cast %17 : vector<1x1x16x16xf32> to vector<16x16xf32>
    %19 = arith.addf %16, %18 : vector<16x16xf32>
    %c0_22 = arith.constant 0 : index
    %c2_23 = arith.constant 2 : index
    %c0_24 = arith.constant 0 : index
    %c0_25 = arith.constant 0 : index
    %20 = vector.load %arg2[%c0_22, %c2_23, %c0_24, %c0_25] : memref<1x4x16x16xf32, #tpu.memory_space<vmem>>, vector<1x1x16x16xf32>
    %21 = vector.shape_cast %20 : vector<1x1x16x16xf32> to vector<16x16xf32>
    %22 = vector.shape_cast %19 : vector<16x16xf32> to vector<1x1x16x16xf32>
    tpu.vector_store %arg2[%c0_22, %c2_23, %c0_24, %c0_25], %22 {strides = array<i32>} : memref<1x4x16x16xf32, #tpu.memory_space<vmem>>, vector<1x1x16x16xf32>,
    %c0_26 = arith.constant 0 : index
    %c3_27 = arith.constant 3 : index
    %c3_28 = arith.constant 3 : index
    %c2_29 = arith.constant 2 : index
    %23 = vector.load %arg1[%c0_26, %c3_27, %c3_28, %c2_29] : memref<1x8x19x19xf32, #tpu.memory_space<vmem>>, vector<1x1x16x16xf32>
    %24 = vector.shape_cast %23 : vector<1x1x16x16xf32> to vector<16x16xf32>
    %c0_30 = arith.constant 0 : index
    %c4 = arith.constant 4 : index
    %c0_31 = arith.constant 0 : index
    %c2_32 = arith.constant 2 : index
    %25 = vector.load %arg1[%c0_30, %c4, %c0_31, %c2_32] : memref<1x8x19x19xf32, #tpu.memory_space<vmem>>, vector<1x1x16x16xf32>
    %26 = vector.shape_cast %25 : vector<1x1x16x16xf32> to vector<16x16xf32>
    %27 = arith.addf %24, %26 : vector<16x16xf32>
    %c0_33 = arith.constant 0 : index
    %c5 = arith.constant 5 : index
    %c1_34 = arith.constant 1 : index
    %c2_35 = arith.constant 2 : index
    %28 = vector.load %arg1[%c0_33, %c5, %c1_34, %c2_35] : memref<1x8x19x19xf32, #tpu.memory_space<vmem>>, vector<1x1x16x16xf32>
    %29 = vector.shape_cast %28 : vector<1x1x16x16xf32> to vector<16x16xf32>
    %30 = arith.addf %27, %29 : vector<16x16xf32>
    %c0_36 = arith.constant 0 : index
    %c3_37 = arith.constant 3 : index
    %c0_38 = arith.constant 0 : index
    %c0_39 = arith.constant 0 : index
    %31 = vector.load %arg2[%c0_36, %c3_37, %c0_38, %c0_39] : memref<1x4x16x16xf32, #tpu.memory_space<vmem>>, vector<1x1x16x16xf32>
    %32 = vector.shape_cast %31 : vector<1x1x16x16xf32> to vector<16x16xf32>
    %33 = vector.shape_cast %30 : vector<16x16xf32> to vector<1x1x16x16xf32>
    tpu.vector_store %arg2[%c0_36, %c3_37, %c0_38, %c0_39], %33 {strides = array<i32>} : memref<1x4x16x16xf32, #tpu.memory_space<vmem>>, vector<1x1x16x16xf32>,
    %c0_40 = arith.constant 0 : index
    %c4_41 = arith.constant 4 : index
    %c2_42 = arith.constant 2 : index
    %c0_43 = arith.constant 0 : index
    %34 = vector.load %arg1[%c0_40, %c4_41, %c2_42, %c0_43] : memref<1x8x19x19xf32, #tpu.memory_space<vmem>>, vector<1x1x16x16xf32>
    %35 = vector.shape_cast %34 : vector<1x1x16x16xf32> to vector<16x16xf32>
    %c0_44 = arith.constant 0 : index
    %c0_45 = arith.constant 0 : index
    %c0_46 = arith.constant 0 : index
    %c0_47 = arith.constant 0 : index
    %36 = vector.load %arg3[%c0_44, %c0_45, %c0_46, %c0_47] : memref<1x4x16x16xf32, #tpu.memory_space<vmem>>, vector<1x1x16x16xf32>
    %37 = vector.shape_cast %36 : vector<1x1x16x16xf32> to vector<16x16xf32>
    %38 = vector.shape_cast %35 : vector<16x16xf32> to vector<1x1x16x16xf32>
    tpu.vector_store %arg3[%c0_44, %c0_45, %c0_46, %c0_47], %38 {strides = array<i32>} : memref<1x4x16x16xf32, #tpu.memory_space<vmem>>, vector<1x1x16x16xf32>,
    %c0_48 = arith.constant 0 : index
    %c6_49 = arith.constant 6 : index
    %c2_50 = arith.constant 2 : index
    %c2_51 = arith.constant 2 : index
    %39 = vector.load %arg1[%c0_48, %c6_49, %c2_50, %c2_51] : memref<1x8x19x19xf32, #tpu.memory_space<vmem>>, vector<1x1x16x16xf32>
    %40 = vector.shape_cast %39 : vector<1x1x16x16xf32> to vector<16x16xf32>
    %c0_52 = arith.constant 0 : index
    %c1_53 = arith.constant 1 : index
    %c0_54 = arith.constant 0 : index
    %c0_55 = arith.constant 0 : index
    %41 = vector.load %arg3[%c0_52, %c1_53, %c0_54, %c0_55] : memref<1x4x16x16xf32, #tpu.memory_space<vmem>>, vector<1x1x16x16xf32>
    %42 = vector.shape_cast %41 : vector<1x1x16x16xf32> to vector<16x16xf32>
    %43 = vector.shape_cast %40 : vector<16x16xf32> to vector<1x1x16x16xf32>
    tpu.vector_store %arg3[%c0_52, %c1_53, %c0_54, %c0_55], %43 {strides = array<i32>} : memref<1x4x16x16xf32, #tpu.memory_space<vmem>>, vector<1x1x16x16xf32>,
    %c0_56 = arith.constant 0 : index
    %c1_57 = arith.constant 1 : index
    %c2_58 = arith.constant 2 : index
    %c1_59 = arith.constant 1 : index
    %44 = vector.load %arg1[%c0_56, %c1_57, %c2_58, %c1_59] : memref<1x8x19x19xf32, #tpu.memory_space<vmem>>, vector<1x1x16x16xf32>
    %45 = vector.shape_cast %44 : vector<1x1x16x16xf32> to vector<16x16xf32>
    %c0_60 = arith.constant 0 : index
    %c5_61 = arith.constant 5 : index
    %c2_62 = arith.constant 2 : index
    %c1_63 = arith.constant 1 : index
    %46 = vector.load %arg1[%c0_60, %c5_61, %c2_62, %c1_63] : memref<1x8x19x19xf32, #tpu.memory_space<vmem>>, vector<1x1x16x16xf32>
    %47 = vector.shape_cast %46 : vector<1x1x16x16xf32> to vector<16x16xf32>
    %48 = arith.addf %45, %47 : vector<16x16xf32>
    %c0_64 = arith.constant 0 : index
    %c7_65 = arith.constant 7 : index
    %c2_66 = arith.constant 2 : index
    %c3_67 = arith.constant 3 : index
    %49 = vector.load %arg1[%c0_64, %c7_65, %c2_66, %c3_67] : memref<1x8x19x19xf32, #tpu.memory_space<vmem>>, vector<1x1x16x16xf32>
    %50 = vector.shape_cast %49 : vector<1x1x16x16xf32> to vector<16x16xf32>
    %51 = arith.addf %48, %50 : vector<16x16xf32>
    %c0_68 = arith.constant 0 : index
    %c2_69 = arith.constant 2 : index
    %c0_70 = arith.constant 0 : index
    %c0_71 = arith.constant 0 : index
    %52 = vector.load %arg3[%c0_68, %c2_69, %c0_70, %c0_71] : memref<1x4x16x16xf32, #tpu.memory_space<vmem>>, vector<1x1x16x16xf32>
    %53 = vector.shape_cast %52 : vector<1x1x16x16xf32> to vector<16x16xf32>
    %54 = vector.shape_cast %51 : vector<16x16xf32> to vector<1x1x16x16xf32>
    tpu.vector_store %arg3[%c0_68, %c2_69, %c0_70, %c0_71], %54 {strides = array<i32>} : memref<1x4x16x16xf32, #tpu.memory_space<vmem>>, vector<1x1x16x16xf32>,
    %c0_72 = arith.constant 0 : index
    %c0_73 = arith.constant 0 : index
    %c2_74 = arith.constant 2 : index
    %c0_75 = arith.constant 0 : index
    %55 = vector.load %arg1[%c0_72, %c0_73, %c2_74, %c0_75] : memref<1x8x19x19xf32, #tpu.memory_space<vmem>>, vector<1x1x16x16xf32>
    %56 = vector.shape_cast %55 : vector<1x1x16x16xf32> to vector<16x16xf32>
    %c0_76 = arith.constant 0 : index
    %c2_77 = arith.constant 2 : index
    %c2_78 = arith.constant 2 : index
    %c2_79 = arith.constant 2 : index
    %57 = vector.load %arg1[%c0_76, %c2_77, %c2_78, %c2_79] : memref<1x8x19x19xf32, #tpu.memory_space<vmem>>, vector<1x1x16x16xf32>
    %58 = vector.shape_cast %57 : vector<1x1x16x16xf32> to vector<16x16xf32>
    %59 = arith.addf %56, %58 : vector<16x16xf32>
    %c0_80 = arith.constant 0 : index
    %c3_81 = arith.constant 3 : index
    %c2_82 = arith.constant 2 : index
    %c3_83 = arith.constant 3 : index
    %60 = vector.load %arg1[%c0_80, %c3_81, %c2_82, %c3_83] : memref<1x8x19x19xf32, #tpu.memory_space<vmem>>, vector<1x1x16x16xf32>
    %61 = vector.shape_cast %60 : vector<1x1x16x16xf32> to vector<16x16xf32>
    %62 = arith.addf %59, %61 : vector<16x16xf32>
    %c0_84 = arith.constant 0 : index
    %c3_85 = arith.constant 3 : index
    %c0_86 = arith.constant 0 : index
    %c0_87 = arith.constant 0 : index
    %63 = vector.load %arg3[%c0_84, %c3_85, %c0_86, %c0_87] : memref<1x4x16x16xf32, #tpu.memory_space<vmem>>, vector<1x1x16x16xf32>
    %64 = vector.shape_cast %63 : vector<1x1x16x16xf32> to vector<16x16xf32>
    %65 = vector.shape_cast %62 : vector<16x16xf32> to vector<1x1x16x16xf32>
    tpu.vector_store %arg3[%c0_84, %c3_85, %c0_86, %c0_87], %65 {strides = array<i32>} : memref<1x4x16x16xf32, #tpu.memory_space<vmem>>, vector<1x1x16x16xf32>,
    return
  }
  func.func @transform_0(%arg0: i32) -> (i32, i32, i32, i32) {
    %c0_i32 = arith.constant 0 : i32
    %c0_i32_0 = arith.constant 0 : i32
    %c0_i32_1 = arith.constant 0 : i32
    %c0_i32_2 = arith.constant 0 : i32
    return %arg0, %c0_i32, %c0_i32_0, %c0_i32_1 : i32, i32, i32, i32
  }
  func.func @transform_1(%arg0: i32) -> (i32, i32, i32, i32) {
    %c0_i32 = arith.constant 0 : i32
    %c0_i32_0 = arith.constant 0 : i32
    %c0_i32_1 = arith.constant 0 : i32
    %c0_i32_2 = arith.constant 0 : i32
    return %arg0, %c0_i32, %c0_i32_0, %c0_i32_1 : i32, i32, i32, i32
  }
  func.func @transform_2(%arg0: i32) -> (i32, i32, i32, i32) {
    %c0_i32 = arith.constant 0 : i32
    %c0_i32_0 = arith.constant 0 : i32
    %c0_i32_1 = arith.constant 0 : i32
    %c0_i32_2 = arith.constant 0 : i32
    return %arg0, %c0_i32, %c0_i32_0, %c0_i32_1 : i32, i32, i32, i32
  }
}

</mosaic_0001>

<llo_original>
// kernel: tpu_custom_call.1
$region0: #{tpu_custom_call.1}
  #allocation0 [shape = 'u32[]', space=smem, size = 0x4, offset = 0x4, fixed_abs, tag = 'smem constant byte address 0x4 - core index']
  #allocation1 [shape = 'u32[72,128]{1,0:T(1,128)}', space=vmem, size = 0x9000, scoped, tag = 'internal scratch']
  %s0 = inlined_call_operand.vmem [shape: f32[2,8,19,19], index: 0, kind: input, shape index: {}]
  %s1 = inlined_call_operand.hbm [shape: f32[2,4,16,16], index: 1, kind: output, shape index: {0}]
  %s2 = inlined_call_operand.hbm [shape: f32[2,4,16,16], index: 2, kind: output, shape index: {1}]
  %3 = xla_tuple %s1, %s2
  %s4 = sld [smem:[#allocation0]]
  $region45: #{tpu_custom_call.1} parent=0
    _
  %s6 = ssub.s32 1, %s4
  %s7 = scalar_select 0, %s6, %s4
  $region1: #{tpu_custom_call.1} parent=0
    #allocation2 [shape = 'u8[65536]{0}', space=vmem, size = 0x10000, scoped, tag = 'output window, operand 0']
    #allocation3 [shape = 's32[2]{0}', space=sflag, size = 0x8, scoped, tag = 'scoped memory for tpu_custom_call.1']
    #allocation4 [shape = 'u8[65536]{0}', space=vmem, size = 0x10000, scoped, tag = 'output window, operand 1']
    #allocation5 [shape = 's32[2]{0}', space=sflag, size = 0x8, scoped, tag = 'scoped memory for tpu_custom_call.1']
    %8 = vsyncpa [#allocation3], 0
    %s9 = scalar_lea.sflag [#allocation3], 1
    %10 = vsyncpa %s9, 0
    %11 = vsyncpa [#allocation5], 0
    %s12 = scalar_lea.sflag [#allocation5], 1
    %13 = vsyncpa %s12, 0
    loop: start=0, step=1, limit=4
    $region2: #{tpu_custom_call.1} parent=1 // loop_pre_header
      _
    $region3: #{tpu_custom_call.1} parent=1 // loop_header
      %s15 = sphi 0, %s19
      %p16 = scmp.ge.s32.totalorder %s15, 4
      %s25 = sphi 0, %s27
      %s28 = sphi 0, %s25
      %s29 = sphi 0, %s28
      %s45 = sphi 0, %s29
      %s51 = sphi 0, %s53
      %s54 = sphi 0, %s51
      %s55 = sphi 0, %s54
      %s71 = sphi 0, %s55
      %s77 = sphi 0, %s79
      %s80 = sphi 0, %s77
      %s81 = sphi 0, %s80
      %s97 = sphi 0, %s81
    $region4: #{tpu_custom_call.1} parent=1 // loop_header_branch
      %18 = sbr.rel (%p16) target = $region8
    $region5: #{tpu_custom_call.1} parent=1 // loop_body
      %s20 = ssub.s32 %s15, 1
      %s21 = ssub.s32 %s15, 2
      %s22 = sadd.s32 %s15, 1
      %s23 = ssub.s32 %s15, %s22
      %p24 = scmp.eq.s32.totalorder %s23, 0
      %s26 = sadd.s32 %s25, 1
      %s27 = scalar_select %p24, %s25, %s26
      %p30 = pneg %p24
      %p31 = scmp.eq.s32.totalorder %s15, 1
      %p32 = por %p30, %p31
      %p33 = scmp.ne.s32.totalorder %s25, %s28
      %p34 = scmp.eq.s32.totalorder %s15, 0
      %p35 = por %p33, %p34
      %p36 = scmp.ne.s32.totalorder %s25, %s28
      %p37 = scmp.eq.s32.totalorder %s20, 1
      %p38 = por %p36, %p37
      %p39 = scmp.ne.s32.totalorder %s28, %s29
      %p40 = scmp.eq.s32.totalorder %s20, 0
      %p41 = por %p39, %p40
      %p42 = scmp.ne.s32.totalorder %s28, %s29
      %p43 = scmp.eq.s32.totalorder %s21, 1
      %p44 = por %p42, %p43
      %p46 = scmp.ne.s32.totalorder %s29, %s45
      %p47 = scmp.eq.s32.totalorder %s21, 0
      %p48 = por %p46, %p47
      %s49 = ssub.s32 %s15, %s22
      %p50 = scmp.eq.s32.totalorder %s49, 0
      %s52 = sadd.s32 %s51, 1
      %s53 = scalar_select %p50, %s51, %s52
      %p56 = pneg %p50
      %p57 = scmp.eq.s32.totalorder %s15, 1
      %p58 = por %p56, %p57
      %p59 = scmp.ne.s32.totalorder %s51, %s54
      %p60 = scmp.eq.s32.totalorder %s15, 0
      %p61 = por %p59, %p60
      %p62 = scmp.ne.s32.totalorder %s51, %s54
      %p63 = scmp.eq.s32.totalorder %s20, 1
      %p64 = por %p62, %p63
      %p65 = scmp.ne.s32.totalorder %s54, %s55
      %p66 = scmp.eq.s32.totalorder %s20, 0
      %p67 = por %p65, %p66
      %p68 = scmp.ne.s32.totalorder %s54, %s55
      %p69 = scmp.eq.s32.totalorder %s21, 1
      %p70 = por %p68, %p69
      %p72 = scmp.ne.s32.totalorder %s55, %s71
      %p73 = scmp.eq.s32.totalorder %s21, 0
      %p74 = por %p72, %p73
      %s75 = ssub.s32 %s15, %s22
      %p76 = scmp.eq.s32.totalorder %s75, 0
      %s78 = sadd.s32 %s77, 1
      %s79 = scalar_select %p76, %s77, %s78
      %p82 = pneg %p76
      %p83 = scmp.eq.s32.totalorder %s15, 1
      %p84 = por %p82, %p83
      %p85 = scmp.ne.s32.totalorder %s77, %s80
      %p86 = scmp.eq.s32.totalorder %s15, 0
      %p87 = por %p85, %p86
      %p88 = scmp.ne.s32.totalorder %s77, %s80
      %p89 = scmp.eq.s32.totalorder %s20, 1
      %p90 = por %p88, %p89
      %p91 = scmp.ne.s32.totalorder %s80, %s81
      %p92 = scmp.eq.s32.totalorder %s20, 0
      %p93 = por %p91, %p92
      %p94 = scmp.ne.s32.totalorder %s80, %s81
      %p95 = scmp.eq.s32.totalorder %s21, 1
      %p96 = por %p94, %p95
      %p98 = scmp.ne.s32.totalorder %s81, %s97
      %p99 = scmp.eq.s32.totalorder %s21, 0
      %p100 = por %p98, %p99
      %p101 = scmp.le.s32.totalorder 1, %s15
      %p102 = scmp.lt.s32.totalorder %s15, 3
      %p103 = pnand %p101, %p102
      %p104 = pneg %p103
      // Predicated region
      $region9: #{tpu_custom_call.1} parent=5 // pred_check
        _
      $region10: #{tpu_custom_call.1} parent=5 // pred_check_branch
        %106 = sbr.rel (%p103) target = $region12
      $region11: #{tpu_custom_call.1} parent=5 // pred_region
        %s107 = ssub.s32 %s15, 1
      $region12: #{tpu_custom_call.1} parent=5 // pred_fallthru
        _
      %p108 = scmp.lt.s32.totalorder %s15, 2
      // Predicated region
      $region13: #{tpu_custom_call.1} parent=5 // pred_check
        %p109 = pneg %p108
      $region14: #{tpu_custom_call.1} parent=5 // pred_check_branch
        %111 = sbr.rel (%p109) target = $region16
      $region15: #{tpu_custom_call.1} parent=5 // pred_region
        // Predicated region
        $region17: #{tpu_custom_call.1} parent=15 // pred_check
          %p112 = pneg %p35
        $region18: #{tpu_custom_call.1} parent=15 // pred_check_branch
          %114 = sbr.rel (%p112) target = $region20
        $region19: #{tpu_custom_call.1} parent=15 // pred_region
          %p115 = scmp.lt.s32.totalorder %s15, 1
          %s116 = scalar_select %p115, %s15, 1
          %s117 = smul.addr %s116, 24
          %s118 = smul.addr %s117, 8
          %s119 = scalar_lea.vmem %s0, %s118
        $region20: #{tpu_custom_call.1} parent=15 // pred_fallthru
          _
      $region16: #{tpu_custom_call.1} parent=5 // pred_fallthru
        _
      %p120 = scmp.le.s32.totalorder 1, %s15
      %p121 = scmp.lt.s32.totalorder %s15, 3
      %p122 = pnand %p120, %p121
      %p123 = pneg %p122
      // Predicated region
      $region21: #{tpu_custom_call.1} parent=5 // pred_check
        _
      $region22: #{tpu_custom_call.1} parent=5 // pred_check_branch
        %125 = sbr.rel (%p122) target = $region24
      $region23: #{tpu_custom_call.1} parent=5 // pred_region
        %s126 = ssub.s32 %s15, 1
        %p127 = scmp.lt.s32.totalorder %s20, 1
        %s128 = scalar_select %p127, %s20, 1
        %s129 = smul.addr %s128, 24
        %s130 = smul.addr %s129, 8
        %s131 = scalar_lea.vmem %s0, %s130
        %p132 = pneg %p41
        %p133 = pneg %p38
        %p134 = pneg %p67
        %p135 = pneg %p64
        %s136 = sand.u32 %s54, 1
        %s137 = scalar_lea.sflag [#allocation3], %s136
        %s138 = sand.u32 %s54, 1
        %s139 = smul.addr %s138, 64
        %s140 = scalar_lea.vmem [#allocation2], %s139
        %p141 = pneg %p93
        %p142 = pneg %p90
        %s143 = sand.u32 %s80, 1
        %s144 = scalar_lea.sflag [#allocation5], %s143
        %s145 = sand.u32 %s80, 1
        %s146 = smul.addr %s145, 64
        %s147 = scalar_lea.vmem [#allocation4], %s146
        %p148 = scmp.lt.s32.totalorder %s20, 1
        %s149 = scalar_select %p148, %s20, 1
        %s150 = smul.addr %s149, 24
        %s151 = smul.addr %s150, 8
        %s152 = scalar_lea.vmem %s0, %s151
        %s153 = scalar_lea.vmem %s152, 48
        %v154 = vld [vmem:[%s153 + $0x2] sm:$0xff]
        %v155 = vld [vmem:[%s153 + $0xa] sm:$0xff]
        %s156 = scalar_lea.vmem %s152, 144
        %v157 = vld [vmem:[%s156 + $0x2] sm:$0xff]
        %v158 = vld [vmem:[%s156 + $0xa] sm:$0xff]
        %v159 = vadd.f32 %v154, %v157
        %v160 = vadd.f32 %v155, %v158
        %163 = vrot.lane.b32.xlu0 %v159, 126
        %v164 = vpop.permute.xlu0 %163
        %165 = vrot.lane.b32.xlu0 %v160, 126
        %v166 = vpop.permute.xlu0 %165
        %vm169 = vcmask 130048
        %170 = vst.msk [vmem:[%s140] sm:$0xff] %vm169, %v164
        %171 = vst.msk [vmem:[%s140 + $0x8] sm:$0xff] %vm169, %v166
        %s172 = scalar_lea.vmem %s140, 16 [#allocation2]
        %173 = vst.msk [vmem:[%s172] sm:$0xff] %vm169, 0.0
        %174 = vst.msk [vmem:[%s172 + $0x8] sm:$0xff] %vm169, 0.0
        %v175 = vld [vmem:[%s152] sm:$0xff]
        %v176 = vld [vmem:[%s152 + $0x8] sm:$0xff]
        %s177 = scalar_lea.vmem %s152, 24
        %v178 = vld [vmem:[%s177 + $0x1] sm:$0xff]
        %v179 = vld [vmem:[%s177 + $0x9] sm:$0xff]
        %v180 = vadd.f32 %v175, %v178
        %v181 = vadd.f32 %v176, %v179
        %s182 = scalar_lea.vmem %s152, 168
        %v183 = vld [vmem:[%s182 + $0x3] sm:$0xff]
        %v184 = vld [vmem:[%s182 + $0xb] sm:$0xff]
        %v185 = vadd.f32 %v180, %v183
        %v186 = vadd.f32 %v181, %v184
        %189 = vrot.lane.b32.xlu0 %v185, 126
        %v190 = vpop.permute.xlu0 %189
        %191 = vrot.lane.b32.xlu0 %v186, 126
        %v192 = vpop.permute.xlu0 %191
        %s195 = scalar_lea.vmem %s140, 32 [#allocation2]
        %196 = vst.msk [vmem:[%s195] sm:$0xff] %vm169, %v190
        %197 = vst.msk [vmem:[%s195 + $0x8] sm:$0xff] %vm169, %v192
        %s198 = scalar_lea.vmem %s152, 72
        %v199 = vld [vmem:[%s198 + $0x3] sm:$0xff]
        %v200 = vld [vmem:[%s198 + $0xb] sm:$0xff]
        %s201 = scalar_lea.vmem %s152, 96
        %v202 = vld [vmem:[%s201] sm:$0xff]
        %v203 = vld [vmem:[%s201 + $0x8] sm:$0xff]
        %v204 = vadd.f32 %v199, %v202
        %v205 = vadd.f32 %v200, %v203
        %s206 = scalar_lea.vmem %s152, 120
        %v207 = vld [vmem:[%s206 + $0x1] sm:$0xff]
        %v208 = vld [vmem:[%s206 + $0x9] sm:$0xff]
        %v209 = vadd.f32 %v204, %v207
        %v210 = vadd.f32 %v205, %v208
        %213 = vrot.lane.b32.xlu0 %v209, 126
        %v214 = vpop.permute.xlu0 %213
        %215 = vrot.lane.b32.xlu0 %v210, 126
        %v216 = vpop.permute.xlu0 %215
        %s219 = scalar_lea.vmem %s140, 48 [#allocation2]
        %220 = vst.msk [vmem:[%s219] sm:$0xff] %vm169, %v214
        %221 = vst.msk [vmem:[%s219 + $0x8] sm:$0xff] %vm169, %v216
        %v222 = vld [vmem:[%s201 + $0x2] sm:$0xff]
        %v223 = vld [vmem:[%s201 + $0xa] sm:$0xff]
        %224 = vst.msk [vmem:[%s147] sm:$0xff] %vm169, %v222
        %225 = vst.msk [vmem:[%s147 + $0x8] sm:$0xff] %vm169, %v223
        %v226 = vld [vmem:[%s156 + $0x2] sm:$0xff]
        %v227 = vld [vmem:[%s156 + $0xa] sm:$0xff]
        %230 = vrot.lane.b32.xlu0 %v226, 126
        %v231 = vpop.permute.xlu0 %230
        %232 = vrot.lane.b32.xlu0 %v227, 126
        %v233 = vpop.permute.xlu0 %232
        %s236 = scalar_lea.vmem %s147, 16 [#allocation4]
        %237 = vst.msk [vmem:[%s236] sm:$0xff] %vm169, %v231
        %238 = vst.msk [vmem:[%s236 + $0x8] sm:$0xff] %vm169, %v233
        %v239 = vld [vmem:[%s177 + $0x2] sm:$0xff]
        %v240 = vld [vmem:[%s177 + $0xa] sm:$0xff]
        %v241 = vld [vmem:[%s206 + $0x2] sm:$0xff]
        %v242 = vld [vmem:[%s206 + $0xa] sm:$0xff]
        %v243 = vadd.f32 %v239, %v241
        %v244 = vadd.f32 %v240, %v242
        %v245 = vld [vmem:[%s182 + $0x2] sm:$0xff]
        %v246 = vld [vmem:[%s182 + $0xa] sm:$0xff]
        %249 = vrot.lane.b32.xlu0 %v245, 126
        %v250 = vpop.permute.xlu0 %249
        %251 = vrot.lane.b32.xlu0 %v246, 126
        %v252 = vpop.permute.xlu0 %251
        %v255 = vadd.f32 %v243, %v250
        %v256 = vadd.f32 %v244, %v252
        %259 = vrot.lane.b32.xlu0 %v255, 127
        %v260 = vpop.permute.xlu0 %259
        %261 = vrot.lane.b32.xlu0 %v256, 127
        %v262 = vpop.permute.xlu0 %261
        %s265 = scalar_lea.vmem %s147, 32 [#allocation4]
        %266 = vst.msk [vmem:[%s265] sm:$0xff] %vm169, %v260
        %267 = vst.msk [vmem:[%s265 + $0x8] sm:$0xff] %vm169, %v262
        %v268 = vld [vmem:[%s152 + $0x2] sm:$0xff]
        %v269 = vld [vmem:[%s152 + $0xa] sm:$0xff]
        %v270 = vld [vmem:[%s153 + $0x2] sm:$0xff]
        %v271 = vld [vmem:[%s153 + $0xa] sm:$0xff]
        %274 = vrot.lane.b32.xlu0 %v270, 126
        %v275 = vpop.permute.xlu0 %274
        %276 = vrot.lane.b32.xlu0 %v271, 126
        %v277 = vpop.permute.xlu0 %276
        %v280 = vadd.f32 %v268, %v275
        %v281 = vadd.f32 %v269, %v277
        %v282 = vld [vmem:[%s198 + $0x2] sm:$0xff]
        %v283 = vld [vmem:[%s198 + $0xa] sm:$0xff]
        %286 = vrot.lane.b32.xlu0 %v282, 125
        %v287 = vpop.permute.xlu0 %286
        %288 = vrot.lane.b32.xlu0 %v283, 125
        %v289 = vpop.permute.xlu0 %288
        %v292 = vadd.f32 %v280, %v287
        %v293 = vadd.f32 %v281, %v289
        %s294 = scalar_lea.vmem %s147, 48 [#allocation4]
        %295 = vst.msk [vmem:[%s294] sm:$0xff] %vm169, %v292
        %296 = vst.msk [vmem:[%s294 + $0x8] sm:$0xff] %vm169, %v293
        %s297 = sand.u32 %s54, 1
        %s298 = scalar_lea.sflag [#allocation3], %s297
        %s299 = sand.u32 %s54, 1
        %s300 = smul.addr %s299, 64
        %s301 = scalar_lea.vmem [#allocation2], %s300
        %s302 = sand.u32 %s80, 1
        %s303 = scalar_lea.sflag [#allocation5], %s302
        %s304 = sand.u32 %s80, 1
        %s305 = smul.addr %s304, 64
        %s306 = scalar_lea.vmem [#allocation4], %s305
        // Predicated region
        $region25: #{tpu_custom_call.1} parent=23 // pred_check
          %p307 = pneg %p64
        $region26: #{tpu_custom_call.1} parent=23 // pred_check_branch
          %309 = sbr.rel (%p307) target = $region28
        $region27: #{tpu_custom_call.1} parent=23 // pred_region
          %311 = vsyncadd %s298, 0
          %s312 = smul.addr %s20, 8
          %s313 = smul.addr %s312, 8
          %s314 = scalar_lea.hbm %s1, %s313
          %s315 = sshll.u32 %s301, 4
          %s316 = int_to_ptr.vmem [resolvable:$true] %s315
          %s317 = sshll.u32 %s314, 4
          %s318 = int_to_ptr.hbm [resolvable:$true] %s317
          %323 = dma.vmem_to_hbm [thread:$0]  %s316, 1024, %s318, %s298, 128, 128, 8
        $region28: #{tpu_custom_call.1} parent=23 // pred_fallthru
          _
        // Predicated region
        $region29: #{tpu_custom_call.1} parent=23 // pred_check
          %p324 = pneg %p90
        $region30: #{tpu_custom_call.1} parent=23 // pred_check_branch
          %326 = sbr.rel (%p324) target = $region32
        $region31: #{tpu_custom_call.1} parent=23 // pred_region
          %328 = vsyncadd %s303, 0
          %s329 = smul.addr %s20, 8
          %s330 = smul.addr %s329, 8
          %s331 = scalar_lea.hbm %s2, %s330
          %s332 = sshll.u32 %s306, 4
          %s333 = int_to_ptr.vmem [resolvable:$true] %s332
          %s334 = sshll.u32 %s331, 4
          %s335 = int_to_ptr.hbm [resolvable:$true] %s334
          %340 = dma.vmem_to_hbm [thread:$0]  %s333, 1024, %s335, %s303, 128, 128, 8
        $region32: #{tpu_custom_call.1} parent=23 // pred_fallthru
          _
      $region24: #{tpu_custom_call.1} parent=5 // pred_fallthru
        _
      %p341 = scmp.le.s32.totalorder 2, %s15
      // Predicated region
      $region33: #{tpu_custom_call.1} parent=5 // pred_check
        %p342 = pneg %p341
      $region34: #{tpu_custom_call.1} parent=5 // pred_check_branch
        %344 = sbr.rel (%p342) target = $region36
      $region35: #{tpu_custom_call.1} parent=5 // pred_region
        %s345 = ssub.s32 %s15, 2
        // Predicated region
        $region37: #{tpu_custom_call.1} parent=35 // pred_check
          %p346 = pneg %p70
        $region38: #{tpu_custom_call.1} parent=35 // pred_check_branch
          %348 = sbr.rel (%p346) target = $region40
        $region39: #{tpu_custom_call.1} parent=35 // pred_region
          %s349 = sand.u32 %s55, 1
          %s350 = scalar_lea.sflag [#allocation3], %s349
          %s351 = sand.u32 %s55, 1
          %s352 = smul.addr %s351, 64
          %s353 = scalar_lea.vmem [#allocation2], %s352
          %355 = dma.done %s350, 1024
        $region40: #{tpu_custom_call.1} parent=35 // pred_fallthru
          _
        // Predicated region
        $region41: #{tpu_custom_call.1} parent=35 // pred_check
          %p356 = pneg %p96
        $region42: #{tpu_custom_call.1} parent=35 // pred_check_branch
          %358 = sbr.rel (%p356) target = $region44
        $region43: #{tpu_custom_call.1} parent=35 // pred_region
          %s359 = sand.u32 %s81, 1
          %s360 = scalar_lea.sflag [#allocation5], %s359
          %s361 = sand.u32 %s81, 1
          %s362 = smul.addr %s361, 64
          %s363 = scalar_lea.vmem [#allocation4], %s362
          %365 = dma.done %s360, 1024
        $region44: #{tpu_custom_call.1} parent=35 // pred_fallthru
          _
      $region36: #{tpu_custom_call.1} parent=5 // pred_fallthru
        _
    $region6: #{tpu_custom_call.1} parent=1 // loop_footer
      %s19 = sadd.s32 1, %s15
    $region7: #{tpu_custom_call.1} parent=1 // loop_footer_branch
      %14 = sbr.rel target = $region3
    $region8: #{tpu_custom_call.1} parent=1 // loop_exit
      _
    %366 = vsyncpa [#allocation3], 1
    %s367 = scalar_lea.sflag [#allocation3], 1
    %368 = vsyncpa %s367, 1
    %369 = vsyncpa [#allocation5], 1
    %s370 = scalar_lea.sflag [#allocation5], 1
    %371 = vsyncpa %s370, 1

</llo_original>
